<compile_context>
chip_gen: v7x
topology: tpu7x:2x2x1
jax: 0.10.0
libtpu: 0.0.40
codegen_flags: <defaults>
</compile_context>

<pallas_src>
import jax
import jax.numpy as jnp
from jax.experimental import pallas as pl
from jax.experimental.pallas import tpu as pltpu


def _prepare_encoding(emb_size: int, max_t: int, dtype=jnp.float32) -> jnp.ndarray:
    """Mirror of SinusPosEncoding._prepare_emb (deterministic buffer setup)."""
    assert emb_size % 2 == 0, "SinusPosEncoding requires an even emb_size"
    half = emb_size // 2
    dim_axis = jnp.power(
        jnp.asarray(10000.0, jnp.float32),
        jnp.arange(half, dtype=jnp.float32) * 2.0 / emb_size,
    )
    timesteps = jnp.arange(max_t, dtype=jnp.float32)
    pos_in = timesteps[:, None] / dim_axis[None, :]               # (max_t, E//2)
    enc = jnp.stack([jnp.sin(pos_in), jnp.cos(pos_in)], axis=-1)  # (max_t, E//2, 2)
    return enc.reshape(max_t, emb_size).astype(dtype)             # interleaved sin/cos


def _add_pos_kernel(x_ref, enc_ref, o_ref):
    # x/out block: (bt, tr, lane); enc block: (tr, lane) broadcast over batch.
    # enc is already in x.dtype (cast once in the wrapper), so this is a pure
    # VPU add; the broadcast along the leading dim needs no cross-lane moves.
    o_ref[...] = x_ref[...] + enc_ref[...][None, :, :]


def _auto_block_bytes() -> int:
    """Per-generation block budget: ~4 MiB on 128 MiB-VMEM chips (v5e/v6e),
    ~2 MiB on 64 MiB-VMEM chips (v7x).  Worst case 6 double-buffered blocks
    (x, enc, out) stay under the 32 MiB scoped VMEM we request."""
    try:
        vmem = int(pltpu.get_tpu_info().vmem_capacity_bytes)
    except Exception:
        return 2 << 20
    return (4 << 20) if vmem >= (128 << 20) else (2 << 20)


def sinus_pos_encoding(x: jnp.ndarray, encoding: jnp.ndarray, *, block_bytes=None):
    """forward(x) = x + encoding[:T];  x: (B, T, E), encoding: (max_t, E)."""
    B, T, E = x.shape
    max_t, e_enc = encoding.shape
    assert E == e_enc, f"emb_size mismatch: x has {E}, encoding has {e_enc}"
    assert T <= max_t, f"sequence length {T} exceeds max_t {max_t}"

    if block_bytes is None:
        block_bytes = _auto_block_bytes()

    # Slice + cast the (tiny) table once in the wrapper.
    enc = encoding[:T].astype(x.dtype)

    itemsize = jnp.dtype(x.dtype).itemsize
    sub = max(8, 32 // itemsize)  # native sublane tile: 8 f32 / 16 bf16 / 32 int8

    # ---- choose a lane-dense view ------------------------------------------
    flat = T * E
    lane_dense_reshape = False
    if E % 128 == 0:
        R, L = T, E                      # last dim already lane-aligned
        x_view, enc_view = x, enc
    elif flat % 128 == 0:
        L = 128                          # coalesce (T, E) into a 128-wide lane dim
        R = flat // L                    # free row-major reshape of x
        x_view = x.reshape(B, R, L)
        enc_view = enc.reshape(R, L)
        lane_dense_reshape = True
    else:
        # TODO(synk): narrow-lane fallback (E % 128 != 0 and T*E % 128 != 0)
        # uses masked partial stores; padding x to a lane-dense shape would
        # cost a full extra HBM copy, so we keep the natural layout.
        R, L = T, E
        x_view, enc_view = x, enc

    # ---- tile sizing ---------------------------------------------------------
    budget_rows = max(1, block_bytes // (L * itemsize))
    if R <= budget_rows or R <= sub:
        tr = R                                       # full row extent (always legal)
    else:
        tr = max(sub, (budget_rows // sub) * sub)    # dtype-aware sublane multiple

    plane_bytes = tr * L * itemsize
    bt = max(1, min(B, block_bytes // max(1, plane_bytes)))  # fold batch into block

    n_row_tiles = pl.cdiv(R, tr)
    n_batch_tiles = pl.cdiv(B, bt)

    # v7x megacore: both axes are "parallel"; make sure at least one of them
    # has >= 2 steps when there is enough work to split across the two cores.
    total_bytes = B * R * L * itemsize
    if (n_row_tiles == 1 and n_batch_tiles == 1 and R >= 2 * sub
            and total_bytes >= (1 << 20)):
        tr = min(R, ((pl.cdiv(R, 2) + sub - 1) // sub) * sub)
        n_row_tiles = pl.cdiv(R, tr)

    out = pl.pallas_call(
        _add_pos_kernel,
        out_shape=jax.ShapeDtypeStruct((B, R, L), x.dtype),
        # Batch innermost: enc block index is constant across it, so its DMA
        # is issued once per row tile instead of once per (row, batch) step.
        grid=(n_row_tiles, n_batch_tiles),
        in_specs=[
            pl.BlockSpec((bt, tr, L), lambda r, b: (b, r, 0)),
            # TODO(synk): pipeline_mode=pl.Buffered(1) here (block index is
            # constant over the inner axis) once verified on the target jax.
            pl.BlockSpec((tr, L), lambda r, b: (r, 0)),
        ],
        out_specs=pl.BlockSpec((bt, tr, L), lambda r, b: (b, r, 0)),
        compiler_params=pltpu.CompilerParams(
            dimension_semantics=("parallel", "parallel"),
            vmem_limit_bytes=32 * 1024 * 1024,
        ),
        # TODO(synk): input_output_aliases={0: 0} when the caller donates x.
        # TODO(synk): for B == 1, compute sin/cos in-kernel (EUP slot is idle)
        # instead of streaming the table: cuts HBM traffic ~1.5x.
    )(x_view, enc_view)

    return out.reshape(B, T, E) if lane_dense_reshape else out


if __name__ == "__main__":
    key = jax.random.PRNGKey(0)

    tests = [
        # (B, T, E, max_t, dtype, block_bytes)  block_bytes=None -> auto per chip
        (2, 8, 32, 16, jnp.float32, None),      # module demo shape: lane-dense flat path
        (2, 16, 128, 32, jnp.float32, None),    # E already lane-aligned: natural (T, E) path
        (2, 40, 32, 64, jnp.float32, 4096),     # tiny budget: multi row-tile + partial edge
        (2, 7, 24, 12, jnp.float32, None),      # narrow-lane fallback (T*E % 128 != 0)
        (2, 64, 48, 80, jnp.bfloat16, 4096),    # bf16: 16-row sublane tiles, partial edges
    ]
    for i, (B, T, E, max_t, dtype, bb) in enumerate(tests):
        k = jax.random.fold_in(key, i)
        x = jax.random.normal(k, (B, T, E), dtype=jnp.float32).astype(dtype)
        encoding = _prepare_encoding(E, max_t)

        out = jax.block_until_ready(sinus_pos_encoding(x, encoding, block_bytes=bb))

        # Reference matches kernel semantics: table cast to x.dtype, then added.
        ref = x + encoding[:T].astype(dtype)[None, :, :]
        assert out.shape == x.shape and out.dtype == x.dtype
        if dtype == jnp.float32:
            ok = jnp.allclose(out, ref, atol=1e-6, rtol=1e-6)
        else:
            ok = jnp.allclose(out.astype(jnp.float32), ref.astype(jnp.float32),
                              atol=1e-2, rtol=1e-2)
        assert ok, f"mismatch in test {i}"

    print("KERNEL_OK")
</pallas_src>

<mosaic_0001>
module attributes {stable_mosaic.version = 11 : i64} {
  func.func @_add_pos_kernel(%arg0: i32, %arg1: i32, %arg2: memref<2x2x128xf32, #tpu.memory_space<vmem>>, %arg3: memref<2x128xf32, #tpu.memory_space<vmem>>, %arg4: memref<2x2x128xf32, #tpu.memory_space<vmem>>) attributes {dimension_semantics = [#tpu.dimension_semantics<parallel>, #tpu.dimension_semantics<parallel>], iteration_bounds = array<i64: 1, 1>, scalar_prefetch = 0 : i64, scratch_operands = 0 : i64, tpu.core_type = #tpu.core_type<tc>, window_params = [{transform_indices = @transform_0, window_bounds = array<i64: 2, 2, 128>}, {transform_indices = @transform_1, window_bounds = array<i64: 2, 128>}, {transform_indices = @transform_2, window_bounds = array<i64: 2, 2, 128>}]} {
    %c0 = arith.constant 0 : index
    %c0_0 = arith.constant 0 : index
    %c0_1 = arith.constant 0 : index
    %0 = vector.load %arg2[%c0, %c0_0, %c0_1] : memref<2x2x128xf32, #tpu.memory_space<vmem>>, vector<2x2x128xf32>
    %c0_2 = arith.constant 0 : index
    %c0_3 = arith.constant 0 : index
    %1 = vector.load %arg3[%c0_2, %c0_3] : memref<2x128xf32, #tpu.memory_space<vmem>>, vector<2x128xf32>
    %2 = vector.shape_cast %1 : vector<2x128xf32> to vector<1x2x128xf32>
    %3 = vector.broadcast %2 : vector<1x2x128xf32> to vector<2x2x128xf32>
    %4 = arith.addf %0, %3 : vector<2x2x128xf32>
    %c0_4 = arith.constant 0 : index
    %c0_5 = arith.constant 0 : index
    %c0_6 = arith.constant 0 : index
    %5 = vector.load %arg4[%c0_4, %c0_5, %c0_6] : memref<2x2x128xf32, #tpu.memory_space<vmem>>, vector<2x2x128xf32>
    tpu.vector_store %arg4[%c0_4, %c0_5, %c0_6], %4 {strides = array<i32>} : memref<2x2x128xf32, #tpu.memory_space<vmem>>, vector<2x2x128xf32>,
    return
  }
  func.func @transform_0(%arg0: i32, %arg1: i32) -> (i32, i32, i32) {
    %c0_i32 = arith.constant 0 : i32
    %c0_i32_0 = arith.constant 0 : i32
    return %arg1, %arg0, %c0_i32 : i32, i32, i32
  }
  func.func @transform_1(%arg0: i32, %arg1: i32) -> (i32, i32) {
    %c0_i32 = arith.constant 0 : i32
    %c0_i32_0 = arith.constant 0 : i32
    return %arg0, %c0_i32 : i32, i32
  }
  func.func @transform_2(%arg0: i32, %arg1: i32) -> (i32, i32, i32) {
    %c0_i32 = arith.constant 0 : i32
    %c0_i32_0 = arith.constant 0 : i32
    return %arg1, %arg0, %c0_i32 : i32, i32, i32
  }
}

</mosaic_0001>

<llo_original>
// kernel: tpu_custom_call.1
$region0: #{tpu_custom_call.1}
  #allocation0 [shape = 'u32[]', space=smem, size = 0x4, offset = 0x4, fixed_abs, tag = 'smem constant byte address 0x4 - core index']
  #allocation1 [shape = 'u32[144,128]{1,0:T(1,128)}', space=vmem, size = 0x12000, scoped, tag = 'internal scratch']
  %s0 = inlined_call_operand.hbm [shape: f32[2,2,128], index: 0, kind: input, shape index: {}]
  %s1 = inlined_call_operand.vmem [shape: f32[2,128], index: 1, kind: input, shape index: {}]
  %s2 = inlined_call_operand.hbm [shape: f32[2,2,128], index: 2, kind: output, shape index: {}]
  %s3 = sld [smem:[#allocation0]]
  $region22: #{tpu_custom_call.1} parent=0
    _
  %s5 = ssub.s32 1, %s3
  %s6 = scalar_select 0, %s5, %s3
  $region1: #{tpu_custom_call.1} parent=0
    #allocation2 [shape = 'u8[2048]{0}', space=vmem, size = 0x800, scoped, tag = 'input window, operand 0, single buffered']
    #allocation3 [shape = 's32[1]{0}', space=sflag, size = 0x4, scoped, tag = 'scoped memory for tpu_custom_call.1']
    #allocation4 [shape = 's32[1]{0}', space=sflag, size = 0x4, scoped, tag = 'scoped memory for tpu_custom_call.1']
    #allocation5 [shape = 'u8[2048]{0}', space=vmem, size = 0x800, scoped, tag = 'output window, operand 0, single buffered']
    %7 = vsyncpa [#allocation3], 0
    %8 = vsyncpa [#allocation4], 0
    // Predicated region
    $region2: #{tpu_custom_call.1} parent=1 // pred_check
      _
    $region3: #{tpu_custom_call.1} parent=1 // pred_check_branch
      %10 = sbr.rel (0) target = $region5
    $region4: #{tpu_custom_call.1} parent=1 // pred_region
      %s12 = ssub.s32 64, 64
      %13 = vsyncadd [#allocation3], %s12
      %s14 = sshll.u32 [#allocation2], 4
      %s15 = int_to_ptr.vmem [resolvable:$true] %s14
      %20 = dma.hbm_to_vmem [thread:$0]  %s0, 64, %s15, [#allocation3], 32, 32, 2
    $region5: #{tpu_custom_call.1} parent=1 // pred_fallthru
      _
    // Predicated region
    $region6: #{tpu_custom_call.1} parent=1 // pred_check
      _
    $region7: #{tpu_custom_call.1} parent=1 // pred_check_branch
      %22 = sbr.rel (0) target = $region9
    $region8: #{tpu_custom_call.1} parent=1 // pred_region
      _
    $region9: #{tpu_custom_call.1} parent=1 // pred_fallthru
      _
    // Predicated region
    $region10: #{tpu_custom_call.1} parent=1 // pred_check
      _
    $region11: #{tpu_custom_call.1} parent=1 // pred_check_branch
      %24 = sbr.rel (0) target = $region13
    $region12: #{tpu_custom_call.1} parent=1 // pred_region
      %25 = dma.done [#allocation3], 64
    $region13: #{tpu_custom_call.1} parent=1 // pred_fallthru
      _
    %v26 = vld [vmem:[#allocation2] sm:$0x3]
    %v27 = vld [vmem:[#allocation2 + $0x2] sm:$0x3]
    %v28 = vld [vmem:[%s1] sm:$0x3]
    %v29 = vadd.f32 %v26, %v28
    %v30 = vadd.f32 %v27, %v28
    %31 = vst [vmem:[#allocation5] sm:$0x3] %v29
    %32 = vst [vmem:[#allocation5 + $0x2] sm:$0x3] %v30
    // Predicated region
    $region14: #{tpu_custom_call.1} parent=1 // pred_check
      _
    $region15: #{tpu_custom_call.1} parent=1 // pred_check_branch
      %34 = sbr.rel (0) target = $region17
    $region16: #{tpu_custom_call.1} parent=1 // pred_region
      %s36 = ssub.s32 64, 64
      %37 = vsyncadd [#allocation4], %s36
      %s38 = sshll.u32 [#allocation5], 4
      %s39 = int_to_ptr.vmem [resolvable:$true] %s38
      %44 = dma.vmem_to_hbm [thread:$0]  %s39, 64, %s2, [#allocation4], 32, 32, 2
    $region17: #{tpu_custom_call.1} parent=1 // pred_fallthru
      _
    // Predicated region
    $region18: #{tpu_custom_call.1} parent=1 // pred_check
      _
    $region19: #{tpu_custom_call.1} parent=1 // pred_check_branch
      %46 = sbr.rel (0) target = $region21
    $region20: #{tpu_custom_call.1} parent=1 // pred_region
      %47 = dma.done [#allocation4], 64
    $region21: #{tpu_custom_call.1} parent=1 // pred_fallthru
      _
    %48 = vsyncpa [#allocation3], 1
    %49 = vsyncpa [#allocation4], 1

</llo_original>
